<compile_context>
chip_gen: v7x
topology: tpu7x:2x2x1
jax: 0.10.0
libtpu: 0.0.40
codegen_flags: <defaults>
</compile_context>

<pallas_src>
import functools

import jax
import jax.numpy as jnp
from jax.experimental import pallas as pl
from jax.experimental.pallas import tpu as pltpu


def _round_up(a, m):
    return (a + m - 1) // m * m


def _vmem_limit_bytes():
    """Generation-aware scoped-VMEM budget (~48 MiB on v7x, ~96 MiB on v5e/v6e)."""
    try:
        cap = pltpu.get_tpu_info().vmem_capacity_bytes
    except Exception:  # fallback if the query is unavailable
        cap = 64 * 1024 * 1024
    if cap >= 128 * 1024 * 1024:      # v5e / v6e: 128 MiB physical VMEM
        return 96 * 1024 * 1024
    return 48 * 1024 * 1024           # v7x: 64 MiB physical per TensorCore


def _perceptron_kernel(x_ref, w_ref, b_ref, o_ref):
    """Single-K-step kernel: out = (x @ W + b >= 0)."""
    z = jnp.dot(x_ref[...], w_ref[...], preferred_element_type=jnp.float32)
    z = z + b_ref[...]
    o_ref[...] = (z >= 0).astype(o_ref.dtype)


def _perceptron_kernel_ksplit(x_ref, w_ref, b_ref, o_ref, acc_ref):
    """Large-K fallback: tiled reduction with an f32 VMEM accumulator."""
    k = pl.program_id(2)

    @pl.when(k == 0)
    def _init():
        acc_ref[...] = jnp.zeros_like(acc_ref)

    acc_ref[...] += jnp.dot(
        x_ref[...], w_ref[...], preferred_element_type=jnp.float32
    )

    @pl.when(k == pl.num_programs(2) - 1)
    def _finalize():
        # Bias add + step only once per output tile.
        z = acc_ref[...] + b_ref[...]
        o_ref[...] = (z >= 0).astype(o_ref.dtype)


@functools.partial(
    jax.jit, static_argnames=("tm_max", "tn_max", "tk_max", "out_dtype")
)
def perceptron_forward(
    x, weights, bias, *, tm_max=512, tn_max=512, tk_max=2048,
    out_dtype=jnp.int8,
):
    """x: (B, K) or (K,), weights: (K, N), bias: (N,) -> (B, N) in {0, 1}.

    Note: torch.where(z >= 0, 1, 0) returns int64; values here are identical,
    the dtype defaults to int8 to quarter the output HBM traffic.
    """
    squeeze = x.ndim == 1
    if squeeze:
        x = x[None, :]
    B, K = x.shape
    K2, N = weights.shape
    assert K == K2, "inner dims must match"

    x = x.astype(jnp.float32)
    weights = weights.astype(jnp.float32)
    b2d = bias.astype(jnp.float32).reshape(1, N)

    # --- tile selection -------------------------------------------------
    # Full-dim blocks for small dims (always layout-legal), otherwise
    # 8/128-aligned tiles; ragged edge blocks are handled by Pallas and the
    # garbage only lands in rows/cols that are never written to the output.
    tm = B if B <= tm_max else tm_max
    tn = N if N <= tn_max else tn_max
    m_blocks = pl.cdiv(B, tm)
    n_blocks = pl.cdiv(N, tn)

    # v7x has 2 TensorCores: expose >= 2 "parallel" blocks for real work.
    if m_blocks * n_blocks == 1 and B >= 256:
        tm = _round_up(pl.cdiv(B, 2), 8)
        m_blocks = pl.cdiv(B, tm)

    vmem_limit = _vmem_limit_bytes()
    out_shape = jax.ShapeDtypeStruct((B, N), out_dtype)

    if K <= tk_max:
        # Common perceptron case: whole K in one tile -> no reduction axis,
        # no accumulator, no init/finalize branches.
        out = pl.pallas_call(
            _perceptron_kernel,
            out_shape=out_shape,
            grid=(m_blocks, n_blocks),
            in_specs=[
                pl.BlockSpec((tm, K), lambda i, j: (i, 0)),
                pl.BlockSpec((K, tn), lambda i, j: (0, j)),
                pl.BlockSpec((1, tn), lambda i, j: (0, j)),
            ],
            out_specs=pl.BlockSpec((tm, tn), lambda i, j: (i, j)),
            compiler_params=pltpu.CompilerParams(
                dimension_semantics=("parallel", "parallel"),
                vmem_limit_bytes=vmem_limit,
            ),
        )(x, weights, b2d)
    else:
        # Large-K fallback: tiled reduction.  Zero-pad K so no garbage enters
        # the accumulation (M/N raggedness is harmless, K is not).
        tk = tk_max
        Kp = _round_up(K, tk)
        if Kp != K:
            x = jnp.pad(x, ((0, 0), (0, Kp - K)))
            weights = jnp.pad(weights, ((0, Kp - K), (0, 0)))
        out = pl.pallas_call(
            _perceptron_kernel_ksplit,
            out_shape=out_shape,
            grid=(m_blocks, n_blocks, Kp // tk),
            in_specs=[
                pl.BlockSpec((tm, tk), lambda i, j, k: (i, k),
                             pipeline_mode=pl.Buffered(3)),
                pl.BlockSpec((tk, tn), lambda i, j, k: (k, j),
                             pipeline_mode=pl.Buffered(3)),
                pl.BlockSpec((1, tn), lambda i, j, k: (0, j)),
            ],
            out_specs=pl.BlockSpec((tm, tn), lambda i, j, k: (i, j)),
            scratch_shapes=[pltpu.VMEM((tm, tn), jnp.float32)],
            compiler_params=pltpu.CompilerParams(
                dimension_semantics=("parallel", "parallel", "arbitrary"),
                vmem_limit_bytes=vmem_limit,
            ),
        )(x, weights, b2d)

    if squeeze:
        out = out[0]
    return out


def _check(x, weights, bias, **kw):
    """Run the kernel and compare against an f32 reference.

    Mismatches are tolerated only where the pre-activation z is within
    rounding distance of the >=0 decision boundary.
    """
    out = jax.block_until_ready(perceptron_forward(x, weights, bias, **kw))
    z_ref = (
        jnp.matmul(x, weights, precision=jax.lax.Precision.HIGHEST)
        + bias.astype(jnp.float32)
    )
    ref = (z_ref >= 0).astype(out.dtype)
    assert out.shape == ref.shape
    eps = 1e-2 * (1.0 + jnp.max(jnp.abs(z_ref)))
    ok = jnp.all(jnp.logical_or(out == ref, jnp.abs(z_ref) < eps))
    assert bool(ok), "mismatch vs reference away from the decision boundary"


if __name__ == "__main__":
    key = jax.random.PRNGKey(0)
    kx, kw, kb = jax.random.split(key, 3)

    # Small shapes consistent with the module: batch=8, in_features=32, out=16.
    B, K, N = 8, 32, 16
    x = jax.random.normal(kx, (B, K), dtype=jnp.float32)
    weights = jax.random.normal(kw, (K, N), dtype=jnp.float32) * 0.5
    bias = jax.random.normal(kb, (N,), dtype=jnp.float32) * 0.1
    _check(x, weights, bias)

    # Moderate shape: single-K-step path with a 2-way "parallel" M split
    # (grid (2, 1)) so both v7x TensorCores get work.
    k2 = jax.random.PRNGKey(1)
    k2x, k2w, k2b = jax.random.split(k2, 3)
    B2, K2, N2 = 512, 1024, 192
    x2 = jax.random.normal(k2x, (B2, K2), dtype=jnp.float32)
    w2 = jax.random.normal(k2w, (K2, N2), dtype=jnp.float32) * 0.05
    b2 = jax.random.normal(k2b, (N2,), dtype=jnp.float32) * 0.1
    _check(x2, w2, b2)

    # Force the tiled-K fallback path (grid (2, 1, 4) with the f32 accumulator
    # and Buffered(3) input pipelining).
    _check(x2, w2, b2, tk_max=256)

    print("KERNEL_OK")
</pallas_src>

<mosaic_0001>
module attributes {stable_mosaic.version = 11 : i64} {
  func.func @_perceptron_kernel(%arg0: i32, %arg1: i32, %arg2: memref<8x32xf32, #tpu.memory_space<vmem>>, %arg3: memref<32x16xf32, #tpu.memory_space<vmem>>, %arg4: memref<1x16xf32, #tpu.memory_space<vmem>>, %arg5: memref<8x16xi8, #tpu.memory_space<vmem>>) attributes {dimension_semantics = [#tpu.dimension_semantics<parallel>, #tpu.dimension_semantics<parallel>], iteration_bounds = array<i64: 1, 1>, scalar_prefetch = 0 : i64, scratch_operands = 0 : i64, tpu.core_type = #tpu.core_type<tc>, window_params = [{transform_indices = @transform_0, window_bounds = array<i64: 8, 32>}, {transform_indices = @transform_1, window_bounds = array<i64: 32, 16>}, {transform_indices = @transform_2, window_bounds = array<i64: 1, 16>}, {transform_indices = @transform_3, window_bounds = array<i64: 8, 16>}]} {
    %c0 = arith.constant 0 : index
    %c0_0 = arith.constant 0 : index
    %0 = vector.load %arg2[%c0, %c0_0] : memref<8x32xf32, #tpu.memory_space<vmem>>, vector<8x32xf32>
    %c0_1 = arith.constant 0 : index
    %c0_2 = arith.constant 0 : index
    %1 = vector.load %arg3[%c0_1, %c0_2] : memref<32x16xf32, #tpu.memory_space<vmem>>, vector<32x16xf32>
    %cst = arith.constant dense<0.000000e+00> : vector<8x16xf32>
    %2 = tpu.matmul %0, %1, %cst {dimension_numbers = #tpu.dot_dimension_numbers<[1], [0], [0], [1], [0, 0, 1, 1], [], []>} : vector<8x32xf32>, vector<32x16xf32>, vector<8x16xf32> -> vector<8x16xf32>
    %c0_3 = arith.constant 0 : index
    %c0_4 = arith.constant 0 : index
    %3 = vector.load %arg4[%c0_3, %c0_4] : memref<1x16xf32, #tpu.memory_space<vmem>>, vector<1x16xf32>
    %4 = vector.broadcast %3 : vector<1x16xf32> to vector<8x16xf32>
    %5 = arith.addf %2, %4 : vector<8x16xf32>
    %cst_5 = arith.constant 0.000000e+00 : f32
    %6 = vector.broadcast %cst_5 : f32 to vector<8x16xf32>
    %7 = arith.cmpf oge, %5, %6 : vector<8x16xf32>
    %8 = arith.extui %7 : vector<8x16xi1> to vector<8x16xi8>
    %c0_6 = arith.constant 0 : index
    %c0_7 = arith.constant 0 : index
    %9 = vector.load %arg5[%c0_6, %c0_7] : memref<8x16xi8, #tpu.memory_space<vmem>>, vector<8x16xi8>
    tpu.vector_store %arg5[%c0_6, %c0_7], %8 {strides = array<i32>} : memref<8x16xi8, #tpu.memory_space<vmem>>, vector<8x16xi8>,
    return
  }
  func.func @transform_0(%arg0: i32, %arg1: i32) -> (i32, i32) {
    %c0_i32 = arith.constant 0 : i32
    %c0_i32_0 = arith.constant 0 : i32
    return %arg0, %c0_i32 : i32, i32
  }
  func.func @transform_1(%arg0: i32, %arg1: i32) -> (i32, i32) {
    %c0_i32 = arith.constant 0 : i32
    %c0_i32_0 = arith.constant 0 : i32
    return %c0_i32, %arg1 : i32, i32
  }
  func.func @transform_2(%arg0: i32, %arg1: i32) -> (i32, i32) {
    %c0_i32 = arith.constant 0 : i32
    %c0_i32_0 = arith.constant 0 : i32
    return %c0_i32, %arg1 : i32, i32
  }
  func.func @transform_3(%arg0: i32, %arg1: i32) -> (i32, i32) {
    %c0_i32 = arith.constant 0 : i32
    return %arg0, %arg1 : i32, i32
  }
}

</mosaic_0001>

<llo_original>
// kernel: perceptron_forward.1
$region0: #{perceptron_forward.1}
  #allocation0 [shape = 'u32[]', space=smem, size = 0x4, offset = 0x4, fixed_abs, tag = 'smem constant byte address 0x4 - core index']
  #allocation1 [shape = 'u32[144,128]{1,0:T(1,128)}', space=vmem, size = 0x12000, scoped, tag = 'internal scratch']
  %s0 = inlined_call_operand.vmem [shape: f32[8,32], index: 0, kind: input, shape index: {}]
  %s1 = inlined_call_operand.vmem [shape: f32[32,16], index: 1, kind: input, shape index: {}]
  %s2 = inlined_call_operand.vmem [shape: f32[1,16], index: 2, kind: input, shape index: {}]
  %s3 = inlined_call_operand.hbm [shape: s8[8,16], index: 3, kind: output, shape index: {}]
  %s4 = sld [smem:[#allocation0]]
  $region22: #{perceptron_forward.1} parent=0
    _
  %s6 = ssub.s32 1, %s4
  %s7 = scalar_select 0, %s6, %s4
  $region1: #{perceptron_forward.1} parent=0
    #allocation2 [shape = 'u8[1024]{0}', space=vmem, size = 0x400, scoped, tag = 'output window, operand 0, single buffered']
    #allocation3 [shape = 's32[1]{0}', space=sflag, size = 0x4, scoped, tag = 'scoped memory for perceptron_forward.1']
    %8 = vsyncpa [#allocation3], 0
    // Predicated region
    $region2: #{perceptron_forward.1} parent=1 // pred_check
      _
    $region3: #{perceptron_forward.1} parent=1 // pred_check_branch
      %10 = sbr.rel (0) target = $region5
    $region4: #{perceptron_forward.1} parent=1 // pred_region
      _
    $region5: #{perceptron_forward.1} parent=1 // pred_fallthru
      _
    // Predicated region
    $region6: #{perceptron_forward.1} parent=1 // pred_check
      _
    $region7: #{perceptron_forward.1} parent=1 // pred_check_branch
      %12 = sbr.rel (0) target = $region9
    $region8: #{perceptron_forward.1} parent=1 // pred_region
      _
    $region9: #{perceptron_forward.1} parent=1 // pred_fallthru
      _
    // Predicated region
    $region10: #{perceptron_forward.1} parent=1 // pred_check
      _
    $region11: #{perceptron_forward.1} parent=1 // pred_check_branch
      %14 = sbr.rel (0) target = $region13
    $region12: #{perceptron_forward.1} parent=1 // pred_region
      _
    $region13: #{perceptron_forward.1} parent=1 // pred_fallthru
      _
    %v17 = vld [vmem:[%s0] sm:$0xff]
    %v18 = vld [vmem:[%s1] sm:$0xff]
    %v19 = vld [vmem:[%s1 + $0x8] sm:$0xff]
    %v20 = vld [vmem:[%s1 + $0x10] sm:$0xff]
    %v21 = vld [vmem:[%s1 + $0x18] sm:$0xff]
    %v22 = vld [vmem:[%s2] sm:$0x1]
    %v24 = vlaneseq
    %v25 = vshrl.u32 %v24, 7
    %v26 = vsub.s32 0, %v25
    %v27 = vrot.slane %v22, %v26
    %vm29 = vcmask 261120
    %v31 = vsel %vm29, %v17, 0
    %33 = vmatprep.subr.mxu0 0.0
    %34 = vmatpush1.msra.mxu0 %v18
    %35 = vmatprep.subr.mxu0 0.0
    %36 = vmatpush1.msra.mxu0 %v19
    %37 = vmatprep.subr.mxu0 0.0
    %38 = vmatpush1.msra.mxu0 %v20
    %39 = vmatprep.subr.mxu0 0.0
    %40 = vmatpush1.msra.mxu0 %v21
    %41 = vmatprep.subr.mxu0 0.0
    %42 = vmatpush1.msra.mxu0 0.0
    %43 = vmatprep.subr.mxu0 0.0
    %44 = vmatpush1.msra.mxu0 0.0
    %45 = vmatprep.subr.mxu0 0.0
    %46 = vmatpush1.msra.mxu0 0.0
    %47 = vmatprep.subr.mxu0 0.0
    %48 = vmatpush1.msra.mxu0 0.0
    %49 = vmatprep.subr.mxu0 0.0
    %50 = vmatpush1.msra.mxu0 0.0
    %51 = vmatprep.subr.mxu0 0.0
    %52 = vmatpush1.msra.mxu0 0.0
    %53 = vmatprep.subr.mxu0 0.0
    %54 = vmatpush1.msra.mxu0 0.0
    %55 = vmatprep.subr.mxu0 0.0
    %56 = vmatpush1.msra.mxu0 0.0
    %57 = vmatprep.subr.mxu0 0.0
    %58 = vmatpush1.msra.mxu0 0.0
    %59 = vmatprep.subr.mxu0 0.0
    %60 = vmatpush1.msra.mxu0 0.0
    %61 = vmatprep.subr.mxu0 0.0
    %62 = vmatpush1.msra.mxu0 0.0
    %63 = vmatprep.subr.mxu0 0.0
    %64 = vmatpush1.msra.mxu0 0.0
    %65 = vmatprep.subr.mxu0 0.0
    %66 = vmatpush1.msra.mxu0 0.0
    %67 = vmatprep.subr.mxu0 0.0
    %68 = vmatpush1.msra.mxu0 0.0
    %69 = vmatprep.subr.mxu0 0.0
    %70 = vmatpush1.msra.mxu0 0.0
    %71 = vmatprep.subr.mxu0 0.0
    %72 = vmatpush1.msra.mxu0 0.0
    %73 = vmatprep.subr.mxu0 0.0
    %74 = vmatpush1.msra.mxu0 0.0
    %75 = vmatprep.subr.mxu0 0.0
    %76 = vmatpush1.msra.mxu0 0.0
    %77 = vmatprep.subr.mxu0 0.0
    %78 = vmatpush1.msra.mxu0 0.0
    %79 = vmatprep.subr.mxu0 0.0
    %80 = vmatpush1.msra.mxu0 0.0
    %81 = vmatprep.subr.mxu0 0.0
    %82 = vmatpush1.msra.mxu0 0.0
    %83 = vmatprep.subr.mxu0 0.0
    %84 = vmatpush1.msra.mxu0 0.0
    %85 = vmatprep.subr.mxu0 0.0
    %86 = vmatpush1.msra.mxu0 0.0
    %87 = vmatprep.subr.mxu0 0.0
    %88 = vmatpush1.msra.mxu0 0.0
    %89 = vmatprep.subr.mxu0 0.0
    %90 = vmatpush1.msra.mxu0 0.0
    %91 = vmatprep.subr.mxu0 0.0
    %92 = vmatpush1.msra.mxu0 0.0
    %93 = vmatprep.subr.mxu0 0.0
    %94 = vmatpush1.msra.mxu0 0.0
    %95 = vmatprep.subr.mxu0 0.0
    %96 = vmatpush1.msra.mxu0 0.0
    %97 = vmatprep.mubr.f32.mxu0 0.0
    %98 = vmatmul.mubr.f32.gmra.mrb[0].mxu0 %v31
    %v99 = vpop.f32.mrb[0].mxu0
    %v100 = vadd.f32 %v27, %v99
    %v101 = vpop.f32.mrb[0].mxu0
    %102 = vdwg.mxu0
    %vm103 = vcmp.ge.f32.partialorder %v100, 0.0
    %vm104 = vmpackc.low %vm103, %vm103
    %vm105 = vmpackc.even %vm104, %vm104
    %v106 = vsel %vm105, 16843009, 0
    %vm107 = vcmask 123904
    %108 = vst.msk [vmem:[#allocation2] sm:$0x3] %vm107, %v106
    // Predicated region
    $region14: #{perceptron_forward.1} parent=1 // pred_check
      _
    $region15: #{perceptron_forward.1} parent=1 // pred_check_branch
      %110 = sbr.rel (0) target = $region17
    $region16: #{perceptron_forward.1} parent=1 // pred_region
      %s112 = ssub.s32 32, 32
      %113 = vsyncadd [#allocation3], %s112
      %s115 = sshll.u32 [#allocation2], 4
      %s116 = int_to_ptr.vmem [resolvable:$true] %s115
      %118 = dma.vmem_to_hbm [thread:$0]  %s116, 32, %s3, [#allocation3]
    $region17: #{perceptron_forward.1} parent=1 // pred_fallthru
      _
    // Predicated region
    $region18: #{perceptron_forward.1} parent=1 // pred_check
      _
    $region19: #{perceptron_forward.1} parent=1 // pred_check_branch
      %120 = sbr.rel (0) target = $region21
    $region20: #{perceptron_forward.1} parent=1 // pred_region
      %121 = dma.done [#allocation3], 32
    $region21: #{perceptron_forward.1} parent=1 // pred_fallthru
      _
    %122 = vsyncpa [#allocation3], 1

</llo_original>
